<compile_context>
chip_gen: v6e
topology: v6e:2x2x1
jax: 0.10.0
libtpu: 0.0.40
codegen_flags: <defaults>
</compile_context>

<pallas_src>
import functools

import jax
import jax.numpy as jnp
from jax import lax
from jax.experimental import pallas as pl
from jax.experimental.pallas import tpu as pltpu


# -----------------------------------------------------------------------------
# StatsNet as a Pallas TPU kernel
# -----------------------------------------------------------------------------
def _round_up(v: int, m: int) -> int:
    return ((v + m - 1) // m) * m


def _stats_kernel(x_ref, mean_ref, std_ref, sum_acc, sq_acc, *, true_len):
    """Grid = (row blocks, L blocks).  Hot loop is pure vld + VALU:
    lane-partial sum / sum-of-squares accumulation.  Cross-lane (XLU) reduce,
    divide and sqrt run once in the last-k epilogue."""
    k = pl.program_id(1)

    @pl.when(k == 0)
    def _init():
        sum_acc[...] = jnp.zeros_like(sum_acc)
        sq_acc[...] = jnp.zeros_like(sq_acc)

    x = x_ref[...].astype(jnp.float32)          # (TN, TL)
    sum_acc[...] += x
    sq_acc[...] += x * x

    @pl.when(k == pl.num_programs(1) - 1)
    def _finalize():
        s = jnp.sum(sum_acc[...], axis=1, keepdims=True)    # (TN, 1)
        sq = jnp.sum(sq_acc[...], axis=1, keepdims=True)    # (TN, 1)
        mean = s * (1.0 / true_len)
        # unbiased (ddof=1) variance, single-pass form; clamp against
        # catastrophic cancellation when |mean| >> std
        var = jnp.maximum((sq - s * mean) / (true_len - 1.0), 0.0)
        mean_ref[...] = mean.astype(mean_ref.dtype)
        std_ref[...] = jnp.sqrt(var).astype(std_ref.dtype)


def stats_net(x, *, row_tile=128, len_tile=2048):
    """x: (B, C, H, W) -> (B, 2, C); matches StatsNet.forward (torch.std ddof=1)."""
    B, C, H, W = x.shape
    N, L = B * C, H * W
    x2d = x.reshape(N, L)

    # Tile sizes: TN multiple of 8 (<=row_tile), TL multiple of 128 (<=len_tile).
    # Input block <= 128*2048*4B = 1 MiB -> double-buffers + 2 MiB scratch fit
    # comfortably even in v7x's smaller VMEM / v5e's 16 MiB default scope.
    TN = min(row_tile, _round_up(N, 8))
    TL = min(len_tile, _round_up(L, 128))
    n_pad, l_pad = _round_up(N, TN), _round_up(L, TL)
    if (n_pad, l_pad) != (N, L):
        # Zero padding leaves sum / sum-of-squares unchanged (we divide by the
        # true L); padded rows are sliced off below.
        x2d = jnp.pad(x2d, ((0, n_pad - N), (0, l_pad - L)))

    grid = (n_pad // TN, l_pad // TL)
    kernel = functools.partial(_stats_kernel, true_len=float(L))

    mean2d, std2d = pl.pallas_call(
        kernel,
        out_shape=(jax.ShapeDtypeStruct((n_pad, 1), x.dtype),
                   jax.ShapeDtypeStruct((n_pad, 1), x.dtype)),
        grid_spec=pltpu.PrefetchScalarGridSpec(
            num_scalar_prefetch=0,
            grid=grid,
            in_specs=[pl.BlockSpec((TN, TL), lambda i, k: (i, k))],
            out_specs=[pl.BlockSpec((TN, 1), lambda i, k: (i, 0)),
                       pl.BlockSpec((TN, 1), lambda i, k: (i, 0))],
            scratch_shapes=[pltpu.VMEM((TN, TL), jnp.float32),   # lane-partial sum
                            pltpu.VMEM((TN, TL), jnp.float32)],  # lane-partial sumsq
        ),
        compiler_params=pltpu.CompilerParams(
            # row axis independent (megacore shard on v7x), L axis is a reduction
            dimension_semantics=("parallel", "arbitrary"),
            vmem_limit_bytes=32 * 1024 * 1024,
        ),
        cost_estimate=pl.CostEstimate(
            flops=3 * n_pad * l_pad,
            transcendentals=0,
            bytes_accessed=int(x2d.size) * x2d.dtype.itemsize + 8 * n_pad,
        ),
    )(x2d)

    mean = mean2d[:N, 0].reshape(B, C)
    std = std2d[:N, 0].reshape(B, C)
    # Tiny (B, 2, C) stack stays in the JAX wrapper (no in-kernel relayout).
    return jnp.stack((mean, std), axis=1)


def _stats_reference(x):
    B, C, H, W = x.shape
    xf = x.reshape(B, C, H * W).astype(jnp.float32)
    mean = jnp.mean(xf, axis=2)
    std = jnp.std(xf, axis=2, ddof=1)
    return jnp.stack((mean, std), axis=1).astype(x.dtype)


# -----------------------------------------------------------------------------
# FeatureExtractor glue (Conv / BN / ReLU via XLA, StatsNet via Pallas)
# -----------------------------------------------------------------------------
def _conv2d(x, w, b, groups=1):
    y = lax.conv_general_dilated(
        x, w, window_strides=(1, 1), padding=((1, 1), (1, 1)),
        dimension_numbers=("NCHW", "OIHW", "NCHW"),
        feature_group_count=groups)
    return y + b[None, :, None, None]


def _conv1d(x, w, b, stride, pad, groups=1):
    y = lax.conv_general_dilated(
        x, w, window_strides=(stride,), padding=((pad, pad),),
        dimension_numbers=("NCH", "OIH", "NCH"),
        feature_group_count=groups)
    return y + b[None, :, None]


# TODO(synk): BatchNorm runs in inference mode with fixed running statistics;
# training-mode batch-statistic computation/updates are not implemented.
def _batchnorm(x, p, eps=1e-5):
    shape = (1, -1) + (1,) * (x.ndim - 2)
    inv = p["gamma"] * lax.rsqrt(p["var"] + eps)
    return (x - p["mean"].reshape(shape)) * inv.reshape(shape) + p["beta"].reshape(shape)


def _squash(t, axis):
    sq = jnp.sum(t * t, axis=axis, keepdims=True)
    scale = sq / (1.0 + sq)
    return scale * t / jnp.sqrt(sq)


def _stack_capsules(params):
    """Stack per-capsule weights along the output-channel axis so all capsules
    run as one conv (conv1) and grouped convs (conv2 / conv1d's)."""
    stacked = {}
    for name in ("w1", "b1", "w2", "b2", "w3", "b3", "w4", "b4"):
        stacked[name] = jnp.concatenate([p[name] for p in params], axis=0)
    for name in ("bn1", "bn2", "bn3", "bn4"):
        stacked[name] = {k: jnp.concatenate([p[name][k] for p in params], axis=0)
                         for k in ("gamma", "beta", "mean", "var")}
    return stacked


@functools.partial(jax.jit, static_argnames=("use_pallas",))
def feature_extractor(x, sp, use_pallas=True):
    """Batched-capsule FeatureExtractor forward.  sp = _stack_capsules(params)."""
    G = sp["w4"].shape[0]                         # stacked (G*1, 8, 3) -> G capsules
    B = x.shape[0]
    h = jax.nn.relu(_batchnorm(_conv2d(x, sp["w1"], sp["b1"]), sp["bn1"]))           # (B, G*64, H, W)
    h = jax.nn.relu(_batchnorm(_conv2d(h, sp["w2"], sp["b2"], groups=G), sp["bn2"])) # (B, G*16, H, W)
    C = h.shape[1] // G                            # 16
    Hh, Ww = h.shape[2], h.shape[3]
    s = (stats_net if use_pallas else _stats_reference)(
        h.reshape(B * G, C, Hh, Ww))               # (B*G, 2, C)
    s = s.reshape(B, G * 2, C)
    h = _batchnorm(_conv1d(s, sp["w3"], sp["b3"], stride=2, pad=2, groups=G), sp["bn3"])  # (B, G*8, 8)
    h = _batchnorm(_conv1d(h, sp["w4"], sp["b4"], stride=1, pad=1, groups=G), sp["bn4"])  # (B, G*1, 8)
    out = jnp.transpose(h.reshape(B, G, 8), (0, 2, 1))                                    # (B, 8, G)
    return _squash(out, axis=-1)


# Per-capsule reference (mirrors the PyTorch ModuleList loop, pure-JAX stats).
def _capsule_forward_ref(x, p):
    h = jax.nn.relu(_batchnorm(_conv2d(x, p["w1"], p["b1"]), p["bn1"]))
    h = jax.nn.relu(_batchnorm(_conv2d(h, p["w2"], p["b2"]), p["bn2"]))
    s = _stats_reference(h)
    h = _batchnorm(_conv1d(s, p["w3"], p["b3"], stride=2, pad=2), p["bn3"])
    h = _batchnorm(_conv1d(h, p["w4"], p["b4"], stride=1, pad=1), p["bn4"])
    return h.reshape(-1, 8)


@jax.jit
def feature_extractor_reference(x, params):
    outs = [_capsule_forward_ref(x, p) for p in params]
    return _squash(jnp.stack(outs, axis=-1), axis=-1)


# -----------------------------------------------------------------------------
# Parameter init
# -----------------------------------------------------------------------------
def _bn_params(c):
    return {"gamma": jnp.ones((c,), jnp.float32),
            "beta": jnp.zeros((c,), jnp.float32),
            "mean": jnp.zeros((c,), jnp.float32),
            "var": jnp.ones((c,), jnp.float32)}


def _init_capsule(key):
    ks = jax.random.split(key, 8)

    def w(k, shape, fan_in):
        return jax.random.normal(k, shape, jnp.float32) * (1.0 / (fan_in ** 0.5))

    return {
        "w1": w(ks[0], (64, 256, 3, 3), 256 * 9),
        "b1": 0.1 * jax.random.normal(ks[1], (64,), jnp.float32),
        "bn1": _bn_params(64),
        "w2": w(ks[2], (16, 64, 3, 3), 64 * 9),
        "b2": 0.1 * jax.random.normal(ks[3], (16,), jnp.float32),
        "bn2": _bn_params(16),
        "w3": w(ks[4], (8, 2, 5), 2 * 5),
        "b3": 0.1 * jax.random.normal(ks[5], (8,), jnp.float32),
        "bn3": _bn_params(8),
        "w4": w(ks[6], (1, 8, 3), 8 * 3),
        "b4": 0.1 * jax.random.normal(ks[7], (1,), jnp.float32),
        "bn4": _bn_params(1),
    }


if __name__ == "__main__":
    key = jax.random.PRNGKey(0)

    # 1) StatsNet kernel unit tests: single block, row-tiled, L-tiled, padded.
    tests = [
        ((2, 4, 16, 16), dict(row_tile=128, len_tile=512)),    # single block
        ((2, 16, 16, 16), dict(row_tile=8, len_tile=128)),     # row blocks + L blocks
        ((4, 64, 32, 32), dict(row_tile=128, len_tile=512)),   # L reduction across grid
        ((3, 5, 9, 7), dict(row_tile=128, len_tile=512)),      # padding both dims
    ]
    for i, (shp, kw) in enumerate(tests):
        xk = jax.random.fold_in(key, i)
        xs = jax.random.normal(xk, shp, jnp.float32) + 0.5
        out = jax.block_until_ready(stats_net(xs, **kw))
        ref = _stats_reference(xs)
        assert out.shape == (shp[0], 2, shp[1]), out.shape
        assert jnp.allclose(out, ref, atol=1e-4, rtol=1e-4), (
            shp, float(jnp.max(jnp.abs(out - ref))))

    # 2) Full FeatureExtractor forward (10 fused capsules) with the Pallas
    #    StatsNet, checked against the per-capsule / pure-JAX reference.
    NO_CAPS = 10
    pkeys = jax.random.split(jax.random.fold_in(key, 100), NO_CAPS)
    params = [_init_capsule(k) for k in pkeys]
    stacked = _stack_capsules(params)
    x = jax.random.normal(jax.random.fold_in(key, 200), (2, 256, 8, 8), jnp.float32)

    out = jax.block_until_ready(feature_extractor(x, stacked, use_pallas=True))
    ref = jax.block_until_ready(feature_extractor_reference(x, params))
    assert out.shape == (2, 8, NO_CAPS), out.shape
    assert bool(jnp.all(jnp.isfinite(out)))
    assert jnp.allclose(out, ref, atol=1e-4, rtol=1e-3), float(jnp.max(jnp.abs(out - ref)))

    print("KERNEL_OK")
</pallas_src>

<mosaic_0001>
module attributes {stable_mosaic.version = 11 : i64} {
  func.func @_stats_kernel(%arg0: i32, %arg1: i32, %arg2: memref<8x256xf32, #tpu.memory_space<vmem>>, %arg3: memref<8x1xf32, #tpu.memory_space<vmem>>, %arg4: memref<8x1xf32, #tpu.memory_space<vmem>>, %arg5: memref<8x256xf32, #tpu.memory_space<vmem>>, %arg6: memref<8x256xf32, #tpu.memory_space<vmem>>) attributes {dimension_semantics = [#tpu.dimension_semantics<parallel>, #tpu.dimension_semantics<arbitrary>], iteration_bounds = array<i64: 1, 1>, scalar_prefetch = 0 : i64, scratch_operands = 2 : i64, tpu.core_type = #tpu.core_type<tc>, window_params = [{transform_indices = @transform_0, window_bounds = array<i64: 8, 256>}, {transform_indices = @transform_1, window_bounds = array<i64: 8, 1>}, {transform_indices = @transform_2, window_bounds = array<i64: 8, 1>}]} {
    %c0_i32 = arith.constant 0 : i32
    %0 = arith.cmpi eq, %arg1, %c0_i32 : i32
    %1 = arith.extui %0 : i1 to i32
    %c0_i32_0 = arith.constant 0 : i32
    %2 = arith.cmpi ne, %1, %c0_i32_0 : i32
    scf.if %2 {
      %cst = arith.constant 0.000000e+00 : f32
      %14 = vector.broadcast %cst : f32 to vector<8x256xf32>
      %c0_12 = arith.constant 0 : index
      %c0_13 = arith.constant 0 : index
      %15 = vector.load %arg5[%c0_12, %c0_13] : memref<8x256xf32, #tpu.memory_space<vmem>>, vector<8x256xf32>
      tpu.vector_store %arg5[%c0_12, %c0_13], %14 {strides = array<i32>} : memref<8x256xf32, #tpu.memory_space<vmem>>, vector<8x256xf32>,
      %cst_14 = arith.constant 0.000000e+00 : f32
      %16 = vector.broadcast %cst_14 : f32 to vector<8x256xf32>
      %c0_15 = arith.constant 0 : index
      %c0_16 = arith.constant 0 : index
      %17 = vector.load %arg6[%c0_15, %c0_16] : memref<8x256xf32, #tpu.memory_space<vmem>>, vector<8x256xf32>
      tpu.vector_store %arg6[%c0_15, %c0_16], %16 {strides = array<i32>} : memref<8x256xf32, #tpu.memory_space<vmem>>, vector<8x256xf32>,
    } else {
    }
    %c0 = arith.constant 0 : index
    %c0_1 = arith.constant 0 : index
    %3 = vector.load %arg2[%c0, %c0_1] : memref<8x256xf32, #tpu.memory_space<vmem>>, vector<8x256xf32>
    %c0_2 = arith.constant 0 : index
    %c0_3 = arith.constant 0 : index
    %4 = vector.load %arg5[%c0_2, %c0_3] : memref<8x256xf32, #tpu.memory_space<vmem>>, vector<8x256xf32>
    %5 = arith.addf %4, %3 : vector<8x256xf32>
    %c0_4 = arith.constant 0 : index
    %c0_5 = arith.constant 0 : index
    %6 = vector.load %arg5[%c0_4, %c0_5] : memref<8x256xf32, #tpu.memory_space<vmem>>, vector<8x256xf32>
    tpu.vector_store %arg5[%c0_4, %c0_5], %5 {strides = array<i32>} : memref<8x256xf32, #tpu.memory_space<vmem>>, vector<8x256xf32>,
    %c0_6 = arith.constant 0 : index
    %c0_7 = arith.constant 0 : index
    %7 = vector.load %arg6[%c0_6, %c0_7] : memref<8x256xf32, #tpu.memory_space<vmem>>, vector<8x256xf32>
    %8 = arith.mulf %3, %3 : vector<8x256xf32>
    %9 = arith.addf %7, %8 : vector<8x256xf32>
    %c0_8 = arith.constant 0 : index
    %c0_9 = arith.constant 0 : index
    %10 = vector.load %arg6[%c0_8, %c0_9] : memref<8x256xf32, #tpu.memory_space<vmem>>, vector<8x256xf32>
    tpu.vector_store %arg6[%c0_8, %c0_9], %9 {strides = array<i32>} : memref<8x256xf32, #tpu.memory_space<vmem>>, vector<8x256xf32>,
    %c0_i32_10 = arith.constant 0 : i32
    %11 = arith.cmpi eq, %arg1, %c0_i32_10 : i32
    %12 = arith.extui %11 : i1 to i32
    %c0_i32_11 = arith.constant 0 : i32
    %13 = arith.cmpi ne, %12, %c0_i32_11 : i32
    scf.if %13 {
      %c0_12 = arith.constant 0 : index
      %c0_13 = arith.constant 0 : index
      %14 = vector.load %arg5[%c0_12, %c0_13] : memref<8x256xf32, #tpu.memory_space<vmem>>, vector<8x256xf32>
      %cst = arith.constant dense<0.000000e+00> : vector<8xf32>
      %15 = vector.multi_reduction <add>, %14, %cst [1] : vector<8x256xf32> to vector<8xf32>
      %16 = vector.shape_cast %15 : vector<8xf32> to vector<8x1xf32>
      %c0_14 = arith.constant 0 : index
      %c0_15 = arith.constant 0 : index
      %17 = vector.load %arg6[%c0_14, %c0_15] : memref<8x256xf32, #tpu.memory_space<vmem>>, vector<8x256xf32>
      %cst_16 = arith.constant dense<0.000000e+00> : vector<8xf32>
      %18 = vector.multi_reduction <add>, %17, %cst_16 [1] : vector<8x256xf32> to vector<8xf32>
      %19 = vector.shape_cast %18 : vector<8xf32> to vector<8x1xf32>
      %cst_17 = arith.constant 3.906250e-03 : f32
      %20 = vector.broadcast %cst_17 : f32 to vector<8x1xf32>
      %21 = arith.mulf %16, %20 : vector<8x1xf32>
      %22 = arith.mulf %16, %21 : vector<8x1xf32>
      %23 = arith.subf %19, %22 : vector<8x1xf32>
      %cst_18 = arith.constant 2.550000e+02 : f32
      %24 = vector.broadcast %cst_18 : f32 to vector<8x1xf32>
      %25 = arith.divf %23, %24 : vector<8x1xf32>
      %cst_19 = arith.constant 0.000000e+00 : f32
      %26 = vector.broadcast %cst_19 : f32 to vector<8x1xf32>
      %27 = arith.maximumf %25, %26 : vector<8x1xf32>
      %c0_20 = arith.constant 0 : index
      %c0_21 = arith.constant 0 : index
      %28 = vector.load %arg3[%c0_20, %c0_21] : memref<8x1xf32, #tpu.memory_space<vmem>>, vector<8x1xf32>
      tpu.vector_store %arg3[%c0_20, %c0_21], %21 {strides = array<i32>} : memref<8x1xf32, #tpu.memory_space<vmem>>, vector<8x1xf32>,
      %29 = math.sqrt %27 : vector<8x1xf32>
      %c0_22 = arith.constant 0 : index
      %c0_23 = arith.constant 0 : index
      %30 = vector.load %arg4[%c0_22, %c0_23] : memref<8x1xf32, #tpu.memory_space<vmem>>, vector<8x1xf32>
      tpu.vector_store %arg4[%c0_22, %c0_23], %29 {strides = array<i32>} : memref<8x1xf32, #tpu.memory_space<vmem>>, vector<8x1xf32>,
    } else {
    }
    return
  }
  func.func @transform_0(%arg0: i32, %arg1: i32) -> (i32, i32) {
    %c0_i32 = arith.constant 0 : i32
    return %arg0, %arg1 : i32, i32
  }
  func.func @transform_1(%arg0: i32, %arg1: i32) -> (i32, i32) {
    %c0_i32 = arith.constant 0 : i32
    %c0_i32_0 = arith.constant 0 : i32
    return %arg0, %c0_i32 : i32, i32
  }
  func.func @transform_2(%arg0: i32, %arg1: i32) -> (i32, i32) {
    %c0_i32 = arith.constant 0 : i32
    %c0_i32_0 = arith.constant 0 : i32
    return %arg0, %c0_i32 : i32, i32
  }
}

</mosaic_0001>

<llo_original>
// kernel: tpu_custom_call.1
$region0: #{tpu_custom_call.1}
  #allocation0 [shape = 'u32[]', space=smem, size = 0x4, offset = 0x4, fixed_abs, tag = 'smem constant byte address 0x4 - core index']
  #allocation1 [shape = 'u32[144,128]{1,0:T(1,128)}', space=vmem, size = 0x12000, scoped, tag = 'internal scratch']
  #allocation2 [shape = 'f32[8,256]{1,0:T(8,128)}', space=vmem, size = 0x2000, scoped, tag = 'scratch operand']
  #allocation3 [shape = 'f32[8,256]{1,0:T(8,128)}', space=vmem, size = 0x2000, scoped, tag = 'scratch operand']
  %s0 = inlined_call_operand.hbm [shape: f32[8,256], index: 0, kind: input, shape index: {}]
  %s1 = inlined_call_operand.vmem [shape: f32[8,1], index: 1, kind: output, shape index: {0}]
  %s2 = inlined_call_operand.vmem [shape: f32[8,1], index: 2, kind: output, shape index: {1}]
  %3 = xla_tuple %s1, %s2
  %s4 = sld [smem:[#allocation0]]
  $region34: #{tpu_custom_call.1} parent=0
    _
  %s6 = ssub.s32 1, %s4
  %s7 = scalar_select 0, %s6, %s4
  $region1: #{tpu_custom_call.1} parent=0
    #allocation4 [shape = 'u8[8192]{0}', space=vmem, size = 0x2000, scoped, tag = 'input window, operand 0, single buffered']
    #allocation5 [shape = 's32[1]{0}', space=sflag, size = 0x4, scoped, tag = 'scoped memory for tpu_custom_call.1']
    %8 = vsyncpa [#allocation5], 0
    // Predicated region
    $region2: #{tpu_custom_call.1} parent=1 // pred_check
      _
    $region3: #{tpu_custom_call.1} parent=1 // pred_check_branch
      %10 = sbr.rel (0) target = $region5
    $region4: #{tpu_custom_call.1} parent=1 // pred_region
      %s12 = ssub.s32 256, 256
      %13 = vsyncadd [#allocation5], %s12
      %s15 = sshll.u32 [#allocation4], 4
      %s16 = int_to_ptr.vmem [resolvable:$true] %s15
      %18 = dma.hbm_to_vmem [thread:$0]  %s0, 256, %s16, [#allocation5]
    $region5: #{tpu_custom_call.1} parent=1 // pred_fallthru
      _
    // Predicated region
    $region6: #{tpu_custom_call.1} parent=1 // pred_check
      _
    $region7: #{tpu_custom_call.1} parent=1 // pred_check_branch
      %20 = sbr.rel (0) target = $region9
    $region8: #{tpu_custom_call.1} parent=1 // pred_region
      %21 = dma.done [#allocation5], 256
    $region9: #{tpu_custom_call.1} parent=1 // pred_fallthru
      _
    %p22 = scmp.eq.s32.totalorder 0, 0
    // Predicated region
    $region10: #{tpu_custom_call.1} parent=1 // pred_check
      %p23 = pneg %p22
    $region11: #{tpu_custom_call.1} parent=1 // pred_check_branch
      %25 = sbr.rel (%p23) target = $region13
    $region12: #{tpu_custom_call.1} parent=1 // pred_region
      %26 = vst [vmem:[#allocation2] sm:$0xff] 0.0
      %27 = vst [vmem:[#allocation2 + $0x8] sm:$0xff] 0.0
      %28 = vst [vmem:[#allocation3] sm:$0xff] 0.0
      %29 = vst [vmem:[#allocation3 + $0x8] sm:$0xff] 0.0
    $region13: #{tpu_custom_call.1} parent=1 // pred_fallthru
      _
    %v30 = vld [vmem:[#allocation4] sm:$0xff]
    %v31 = vld [vmem:[#allocation4 + $0x8] sm:$0xff]
    %v32 = vld [vmem:[#allocation2] sm:$0xff]
    %v33 = vld [vmem:[#allocation2 + $0x8] sm:$0xff]
    %v34 = vadd.f32 %v32, %v30
    %v35 = vadd.f32 %v33, %v31
    %36 = vst [vmem:[#allocation2] sm:$0xff] %v34
    %37 = vst [vmem:[#allocation2 + $0x8] sm:$0xff] %v35
    %v38 = vld [vmem:[#allocation3] sm:$0xff]
    %v39 = vld [vmem:[#allocation3 + $0x8] sm:$0xff]
    %v40 = vmul.f32 %v30, %v30
    %v41 = vmul.f32 %v31, %v31
    %v42 = vadd.f32 %v38, %v40
    %v43 = vadd.f32 %v39, %v41
    %44 = vst [vmem:[#allocation3] sm:$0xff] %v42
    %45 = vst [vmem:[#allocation3 + $0x8] sm:$0xff] %v43
    // Predicated region
    $region14: #{tpu_custom_call.1} parent=1 // pred_check
      %p46 = pneg %p22
    $region15: #{tpu_custom_call.1} parent=1 // pred_check_branch
      %48 = sbr.rel (%p46) target = $region17
    $region16: #{tpu_custom_call.1} parent=1 // pred_region
      %v49 = vld [vmem:[#allocation2] sm:$0xff]
      %v50 = vld [vmem:[#allocation2 + $0x8] sm:$0xff]
      %v51 = vadd.f32 %v49, %v50
      %52 = vadd.xlane.f32.xlu0 %v51
      %v53 = vpop.xlane.xlu0 %52
      %v54 = vld [vmem:[#allocation3] sm:$0xff]
      %v55 = vld [vmem:[#allocation3 + $0x8] sm:$0xff]
      %v56 = vadd.f32 %v54, %v55
      %57 = vadd.xlane.f32.xlu0 %v56
      %v58 = vpop.xlane.xlu0 %57
      %v59 = vmul.f32 %v53, 0.00390625
      %v60 = vmul.f32 %v53, %v59
      %v61 = vsub.f32 %v58, %v60
      %v62 = vrcp.pop 255.0
      %v63 = vmul.f32 %v61, %v62
      %v64 = vmax.f32 %v63, 0.0
      %vm65 = vcmask 7168
      %66 = vst.msk [vmem:[%s1] sm:$0xff] %vm65, %v59
      %v67 = vrsqrt.pop %v64
      %v68 = vmul.f32 %v64, %v67
      %vm69 = vcmp.eq.f32.partialorder %v64, inf
      %v70 = vsel %vm69, %v64, %v68
      %vm71 = vcmp.eq.f32.partialorder %v64, 0.0
      %v72 = vand.u32 %v64, 2147483648
      %v73 = vsel %vm71, %v72, %v70
      %74 = vst.msk [vmem:[%s2] sm:$0xff] %vm65, %v73
    $region17: #{tpu_custom_call.1} parent=1 // pred_fallthru
      _
    // Predicated region
    $region18: #{tpu_custom_call.1} parent=1 // pred_check
      _
    $region19: #{tpu_custom_call.1} parent=1 // pred_check_branch
      %76 = sbr.rel (0) target = $region21
    $region20: #{tpu_custom_call.1} parent=1 // pred_region
      _
    $region21: #{tpu_custom_call.1} parent=1 // pred_fallthru
      _
    // Predicated region
    $region22: #{tpu_custom_call.1} parent=1 // pred_check
      _
    $region23: #{tpu_custom_call.1} parent=1 // pred_check_branch
      %78 = sbr.rel (0) target = $region25
    $region24: #{tpu_custom_call.1} parent=1 // pred_region
      _
    $region25: #{tpu_custom_call.1} parent=1 // pred_fallthru
      _
    // Predicated region
    $region26: #{tpu_custom_call.1} parent=1 // pred_check
      _
    $region27: #{tpu_custom_call.1} parent=1 // pred_check_branch
      %80 = sbr.rel (0) target = $region29
    $region28: #{tpu_custom_call.1} parent=1 // pred_region
      _
    $region29: #{tpu_custom_call.1} parent=1 // pred_fallthru
      _
    // Predicated region
    $region30: #{tpu_custom_call.1} parent=1 // pred_check
      _
    $region31: #{tpu_custom_call.1} parent=1 // pred_check_branch
      %82 = sbr.rel (0) target = $region33
    $region32: #{tpu_custom_call.1} parent=1 // pred_region
      _
    $region33: #{tpu_custom_call.1} parent=1 // pred_fallthru
      _
    %83 = vsyncpa [#allocation5], 1

</llo_original>
